<compile_context>
chip_gen: v7x
topology: tpu7x:2x2x1
jax: 0.10.0
libtpu: 0.0.40
codegen_flags: <defaults>
</compile_context>

<pallas_src>
import functools

import jax
import jax.numpy as jnp
from jax.experimental import pallas as pl
from jax.experimental.pallas import tpu as pltpu


def _sublane_multiple(itemsize):
    return {4: 8, 2: 16, 1: 32}.get(itemsize, 8)


# ---------------------------------------------------------------------------
# Kernel 1: per-row cross-entropy losses, batch-tiled "parallel" grid.
# ---------------------------------------------------------------------------
def _nll_kernel(labels_ref, logits_ref, out_ref, *, batch):
    i = pl.program_id(0)
    tb, c = logits_ref.shape

    logits = logits_ref[...].astype(jnp.float32)              # (tb, c)
    labels = labels_ref[...]                                   # (tb, 1) int32

    # validity mask for the ragged last batch block (no wrapper-side pad)
    row = i * tb + jax.lax.broadcasted_iota(jnp.int32, (tb, 1), 0)
    valid = row < batch                                        # (tb, 1) bool

    # numerically stable log-sum-exp (XLU lane reductions; keeps f32 exact)
    m = jnp.max(logits, axis=-1, keepdims=True)                # (tb, 1)
    sumexp = jnp.sum(jnp.exp(logits - m), axis=-1, keepdims=True)

    # label-logit selection: compare + where + lane sum (no MXU dot)
    col = jax.lax.broadcasted_iota(jnp.int32, (tb, c), 1)
    sel = jnp.sum(jnp.where(col == labels, logits, 0.0),
                  axis=-1, keepdims=True)                      # (tb, 1)

    # where-select (not a multiply) so NaN/Inf in garbage rows never leaks
    out_ref[...] = jnp.where(valid, m + jnp.log(sumexp) - sel, 0.0)


def _mean_cross_entropy(labels, logits, *, max_rows_per_tile=None):
    b, c = logits.shape
    itemsize = jnp.dtype(logits.dtype).itemsize
    sub = _sublane_multiple(itemsize)

    # Tile rows from a ~6 MiB f32-equivalent budget (tb * c * 4 bytes); the
    # in-kernel temporaries (~3-4x that) plus the double-buffered native-dtype
    # input are covered by vmem_limit_bytes below.
    # TODO(synk): for vocab-scale C (c*4 bytes/row approaching the budget), add
    # an inner "arbitrary" class-dim grid axis with online max/sum-exp so tb
    # stays lane/sublane friendly instead of collapsing toward 8 rows.
    budget_f32 = 6 * 1024 * 1024
    tb = max(sub, (budget_f32 // max(c * 4, 1)) // sub * sub)
    if max_rows_per_tile is not None:
        tb = min(tb, max(sub, (max_rows_per_tile // sub) * sub))
    if tb >= b:
        tb = b                      # single full-extent block (no alignment need)
    num_tiles = pl.cdiv(b, tb)

    labels2d = labels.reshape(b, 1).astype(jnp.int32)

    tile_native = tb * c * itemsize
    tile_f32 = tb * c * 4
    vmem_limit = int(min(48 << 20,
                         max(32 << 20, 2 * tile_native + 4 * tile_f32 + (4 << 20))))

    per_row = pl.pallas_call(
        functools.partial(_nll_kernel, batch=b),
        out_shape=jax.ShapeDtypeStruct((b, 1), jnp.float32),
        grid_spec=pltpu.PrefetchScalarGridSpec(
            num_scalar_prefetch=0,
            grid=(num_tiles,),
            in_specs=[
                pl.BlockSpec((tb, 1), lambda i: (i, 0)),   # labels
                pl.BlockSpec((tb, c), lambda i: (i, 0)),   # logits (native dtype)
            ],
            out_specs=pl.BlockSpec((tb, 1), lambda i: (i, 0)),
        ),
        compiler_params=pltpu.CompilerParams(
            dimension_semantics=("parallel",),             # megacore-shardable
            vmem_limit_bytes=vmem_limit),
        cost_estimate=pl.CostEstimate(
            flops=6 * b * c,
            transcendentals=b * c + b,
            bytes_accessed=b * c * itemsize + b * 4 + b * 4),
    )(labels2d, logits)

    # CrossEntropyLoss default reduction = 'mean' over the true batch size.
    return jnp.sum(per_row) / jnp.float32(b)


# ---------------------------------------------------------------------------
# Kernel 2: sum(params**2) over a lane-dense (rows, 128) view, tiled rows.
# ---------------------------------------------------------------------------
def _ssq_kernel(p_ref, out_ref, *, rows):
    i = pl.program_id(0)
    tp = p_ref.shape[0]
    p = p_ref[...].astype(jnp.float32)                         # (tp, 128)
    r = i * tp + jax.lax.broadcasted_iota(jnp.int32, (tp, 1), 0)
    valid = r < rows                                           # (tp, 1)
    sq = jnp.where(valid, p * p, 0.0)                          # select, not multiply
    out_ref[...] = jnp.sum(sq, axis=-1, keepdims=True)         # (tp, 1)


def _sum_squares(params, *, jax_threshold=1 << 20, max_tile_rows=16384):
    p = params.reshape(-1)
    n = p.shape[0]

    # Small parameter vectors: a pallas_call is pure fixed overhead; let XLA do it.
    if n < max(jax_threshold, 128):
        return jnp.sum(p.astype(jnp.float32) ** 2)

    itemsize = jnp.dtype(p.dtype).itemsize
    rows = n // 128
    main_elems = rows * 128

    # Fold the <128-element ragged tail in JAX instead of a jnp.pad copy.
    if main_elems != n:
        tail_ssq = jnp.sum(p[main_elems:].astype(jnp.float32) ** 2)
        p_main = jax.lax.slice(p, (0,), (main_elems,))
    else:
        tail_ssq = jnp.float32(0.0)
        p_main = p
    p2d = p_main.reshape(rows, 128)                            # lane-dense view

    tp_cap = max(8, (max_tile_rows // 8) * 8)                  # ~8 MiB f32 default
    tp = rows if rows <= tp_cap else tp_cap
    num_tiles = pl.cdiv(rows, tp)

    tile_native = tp * 128 * itemsize
    tile_f32 = tp * 128 * 4
    vmem_limit = int(min(48 << 20,
                         max(32 << 20, 2 * tile_native + 3 * tile_f32 + (4 << 20))))

    per_row = pl.pallas_call(
        functools.partial(_ssq_kernel, rows=rows),
        out_shape=jax.ShapeDtypeStruct((rows, 1), jnp.float32),
        grid_spec=pltpu.PrefetchScalarGridSpec(
            num_scalar_prefetch=0,
            grid=(num_tiles,),
            in_specs=[pl.BlockSpec((tp, 128), lambda i: (i, 0))],
            out_specs=pl.BlockSpec((tp, 1), lambda i: (i, 0)),
        ),
        compiler_params=pltpu.CompilerParams(
            dimension_semantics=("parallel",),
            vmem_limit_bytes=vmem_limit),
        cost_estimate=pl.CostEstimate(
            flops=2 * main_elems, transcendentals=0,
            bytes_accessed=main_elems * itemsize + rows * 4),
    )(p2d)

    return jnp.sum(per_row) + tail_ssq


# ---------------------------------------------------------------------------
# KappaELBoLoss.forward
# ---------------------------------------------------------------------------
def kappa_elbo_loss(labels, logits, params, *, kappa, sigma_param, N=1):
    """Mirrors KappaELBoLoss.forward(labels, logits, params, N)."""
    num_params = params.shape[0]  # == len(params)

    nll = _mean_cross_entropy(labels, logits)
    loc_diff_norm = _sum_squares(params)

    tau_star = jnp.float32(1.0)
    sp = jax.nn.softplus(jnp.float32(sigma_param))
    term1 = sp ** 2 / tau_star * num_params
    term2 = 1.0 / tau_star * loc_diff_norm
    term3 = num_params * jnp.log(tau_star) - num_params * jnp.log(sp ** 2)
    kl = 0.5 * (term1 + term2 - num_params + term3)
    loss = nll + (1.0 / kappa) * (1.0 / N) * kl

    return {"kl": kl, "tau_star": tau_star, "loss": loss, "nll": nll}


def _reference(labels, logits, params, *, kappa, sigma_param, N=1):
    # pure-JAX reference for a sanity check
    lse = jax.nn.logsumexp(logits.astype(jnp.float32), axis=-1)
    sel = jnp.take_along_axis(
        logits.astype(jnp.float32), labels[:, None].astype(jnp.int32), axis=-1
    )[:, 0]
    nll = jnp.mean(lse - sel)
    num_params = params.shape[0]
    loc_diff_norm = jnp.sum(params.astype(jnp.float32) ** 2)
    tau_star = jnp.float32(1.0)
    sp = jax.nn.softplus(jnp.float32(sigma_param))
    term1 = sp ** 2 / tau_star * num_params
    term2 = 1.0 / tau_star * loc_diff_norm
    term3 = num_params * jnp.log(tau_star) - num_params * jnp.log(sp ** 2)
    kl = 0.5 * (term1 + term2 - num_params + term3)
    return {"kl": kl, "tau_star": tau_star,
            "loss": nll + (1.0 / kappa) * (1.0 / N) * kl, "nll": nll}


if __name__ == "__main__":
    kappa = 2.0
    sigma_param = 0.5  # scalar sigma parameter of the module

    key = jax.random.PRNGKey(0)
    k_logits, k_labels, k_params, k_big = jax.random.split(key, 4)

    # Case 1: small shapes (B % 8 != 0, non-128 C, non-128 P), f32 logits.
    B, C, P = 10, 20, 300
    logits = jax.random.normal(k_logits, (B, C), dtype=jnp.float32)
    labels = jax.random.randint(k_labels, (B,), 0, C, dtype=jnp.int32)
    params = jax.random.normal(k_params, (P,), dtype=jnp.float32) * 0.1

    out = jax.block_until_ready(
        kappa_elbo_loss(labels, logits, params,
                        kappa=kappa, sigma_param=sigma_param, N=1))
    ref = _reference(labels, logits, params,
                     kappa=kappa, sigma_param=sigma_param, N=1)
    for k in ("nll", "kl", "loss", "tau_star"):
        assert jnp.allclose(out[k], ref[k], rtol=1e-5, atol=1e-5), (k, out[k], ref[k])

    # Case 2: native-bf16 logits (streamed without a wrapper-side f32 copy).
    logits_bf16 = logits.astype(jnp.bfloat16)
    out_bf = jax.block_until_ready(
        kappa_elbo_loss(labels, logits_bf16, params,
                        kappa=kappa, sigma_param=sigma_param, N=1))
    ref_bf = _reference(labels, logits_bf16, params,
                        kappa=kappa, sigma_param=sigma_param, N=1)
    for k in ("nll", "kl", "loss", "tau_star"):
        assert jnp.allclose(out_bf[k], ref_bf[k], rtol=1e-4, atol=1e-4), (
            k, out_bf[k], ref_bf[k])

    # Case 3: multi-tile NLL with a ragged last block (no jnp.pad of logits).
    B3 = 20
    logits3 = jax.random.normal(k_big, (B3, C), dtype=jnp.float32)
    labels3 = jax.random.randint(k_labels, (B3,), 0, C, dtype=jnp.int32)
    nll3 = jax.block_until_ready(
        _mean_cross_entropy(labels3, logits3, max_rows_per_tile=8))
    lse3 = jax.nn.logsumexp(logits3, axis=-1)
    sel3 = jnp.take_along_axis(logits3, labels3[:, None], axis=-1)[:, 0]
    assert jnp.allclose(nll3, jnp.mean(lse3 - sel3), rtol=1e-5, atol=1e-5), nll3

    # Case 4: sum-of-squares kernel path, multi-tile + a non-128 ragged tail.
    P4 = 50_000
    params4 = jax.random.normal(k_big, (P4,), dtype=jnp.float32) * 0.1
    ssq4 = jax.block_until_ready(
        _sum_squares(params4, jax_threshold=1024, max_tile_rows=128))
    assert jnp.allclose(ssq4, jnp.sum(params4 ** 2), rtol=1e-5, atol=1e-4), ssq4

    print("KERNEL_OK")
</pallas_src>

<mosaic_0001>
module attributes {stable_mosaic.version = 11 : i64} {
  func.func @_nll_kernel(%arg0: i32, %arg1: memref<10x1xi32, #tpu.memory_space<vmem>>, %arg2: memref<10x20xf32, #tpu.memory_space<vmem>>, %arg3: memref<10x1xf32, #tpu.memory_space<vmem>>) attributes {dimension_semantics = [#tpu.dimension_semantics<parallel>], iteration_bounds = array<i64: 1>, scalar_prefetch = 0 : i64, scratch_operands = 0 : i64, tpu.core_type = #tpu.core_type<tc>, window_params = [{transform_indices = @transform_0, window_bounds = array<i64: 10, 1>}, {transform_indices = @transform_1, window_bounds = array<i64: 10, 20>}, {transform_indices = @transform_2, window_bounds = array<i64: 10, 1>}]} {
    %c0 = arith.constant 0 : index
    %c0_0 = arith.constant 0 : index
    %0 = vector.load %arg2[%c0, %c0_0] : memref<10x20xf32, #tpu.memory_space<vmem>>, vector<10x20xf32>
    %c0_1 = arith.constant 0 : index
    %c0_2 = arith.constant 0 : index
    %1 = vector.load %arg1[%c0_1, %c0_2] : memref<10x1xi32, #tpu.memory_space<vmem>>, vector<10x1xi32>
    %c10_i32 = arith.constant 10 : i32
    %2 = arith.muli %arg0, %c10_i32 : i32
    %3 = tpu.iota {dimensions = array<i32: 0>} : vector<10x1xi32>
    %4 = vector.broadcast %2 : i32 to vector<10x1xi32>
    %5 = arith.addi %4, %3 : vector<10x1xi32>
    %c10_i32_3 = arith.constant 10 : i32
    %6 = vector.broadcast %c10_i32_3 : i32 to vector<10x1xi32>
    %7 = arith.cmpi slt, %5, %6 : vector<10x1xi32>
    %cst = arith.constant dense<0xFF800000> : vector<10xf32>
    %8 = vector.multi_reduction <maximumf>, %0, %cst [1] : vector<10x20xf32> to vector<10xf32>
    %9 = vector.shape_cast %8 : vector<10xf32> to vector<10x1xf32>
    %10 = vector.broadcast %9 : vector<10x1xf32> to vector<10x20xf32>
    %11 = arith.subf %0, %10 : vector<10x20xf32>
    %12 = math.exp %11 : vector<10x20xf32>
    %cst_4 = arith.constant dense<0.000000e+00> : vector<10xf32>
    %13 = vector.multi_reduction <add>, %12, %cst_4 [1] : vector<10x20xf32> to vector<10xf32>
    %14 = vector.shape_cast %13 : vector<10xf32> to vector<10x1xf32>
    %15 = tpu.iota {dimensions = array<i32: 1>} : vector<10x20xi32>
    %16 = vector.broadcast %1 : vector<10x1xi32> to vector<10x20xi32>
    %17 = arith.cmpi eq, %15, %16 : vector<10x20xi32>
    %cst_5 = arith.constant 0.000000e+00 : f32
    %18 = vector.broadcast %cst_5 : f32 to vector<10x20xf32>
    %19 = arith.select %17, %0, %18 : vector<10x20xi1>, vector<10x20xf32>
    %cst_6 = arith.constant dense<0.000000e+00> : vector<10xf32>
    %20 = vector.multi_reduction <add>, %19, %cst_6 [1] : vector<10x20xf32> to vector<10xf32>
    %21 = vector.shape_cast %20 : vector<10xf32> to vector<10x1xf32>
    %22 = math.log %14 : vector<10x1xf32>
    %23 = arith.addf %9, %22 : vector<10x1xf32>
    %24 = arith.subf %23, %21 : vector<10x1xf32>
    %cst_7 = arith.constant 0.000000e+00 : f32
    %25 = vector.broadcast %cst_7 : f32 to vector<10x1xf32>
    %26 = arith.select %7, %24, %25 : vector<10x1xi1>, vector<10x1xf32>
    %c0_8 = arith.constant 0 : index
    %c0_9 = arith.constant 0 : index
    %27 = vector.load %arg3[%c0_8, %c0_9] : memref<10x1xf32, #tpu.memory_space<vmem>>, vector<10x1xf32>
    tpu.vector_store %arg3[%c0_8, %c0_9], %26 {strides = array<i32>} : memref<10x1xf32, #tpu.memory_space<vmem>>, vector<10x1xf32>,
    return
  }
  func.func @transform_0(%arg0: i32) -> (i32, i32) {
    %c0_i32 = arith.constant 0 : i32
    %c0_i32_0 = arith.constant 0 : i32
    return %arg0, %c0_i32 : i32, i32
  }
  func.func @transform_1(%arg0: i32) -> (i32, i32) {
    %c0_i32 = arith.constant 0 : i32
    %c0_i32_0 = arith.constant 0 : i32
    return %arg0, %c0_i32 : i32, i32
  }
  func.func @transform_2(%arg0: i32) -> (i32, i32) {
    %c0_i32 = arith.constant 0 : i32
    %c0_i32_0 = arith.constant 0 : i32
    return %arg0, %c0_i32 : i32, i32
  }
}

</mosaic_0001>

<llo_original>
// kernel: tpu_custom_call.1
$region0: #{tpu_custom_call.1}
  #allocation0 [shape = 'u32[]', space=smem, size = 0x4, offset = 0x4, fixed_abs, tag = 'smem constant byte address 0x4 - core index']
  #allocation1 [shape = 'u32[144,128]{1,0:T(1,128)}', space=vmem, size = 0x12000, scoped, tag = 'internal scratch']
  %s0 = inlined_call_operand.vmem [shape: s32[10,1], index: 0, kind: input, shape index: {}]
  %s1 = inlined_call_operand.vmem [shape: f32[10,20], index: 1, kind: input, shape index: {}]
  %s2 = inlined_call_operand.vmem [shape: f32[10,1], index: 2, kind: output, shape index: {}]
  %s3 = sld [smem:[#allocation0]]
  $region18: #{tpu_custom_call.1} parent=0
    _
  %s5 = ssub.s32 1, %s3
  %s6 = scalar_select 0, %s5, %s3
  // Predicated region
  $region2: #{tpu_custom_call.1} parent=0 // pred_check
    _
  $region3: #{tpu_custom_call.1} parent=0 // pred_check_branch
    %8 = sbr.rel (0) target = $region5
  $region4: #{tpu_custom_call.1} parent=0 // pred_region
    _
  $region5: #{tpu_custom_call.1} parent=0 // pred_fallthru
    _
  // Predicated region
  $region6: #{tpu_custom_call.1} parent=0 // pred_check
    _
  $region7: #{tpu_custom_call.1} parent=0 // pred_check_branch
    %10 = sbr.rel (0) target = $region9
  $region8: #{tpu_custom_call.1} parent=0 // pred_region
    _
  $region9: #{tpu_custom_call.1} parent=0 // pred_fallthru
    _
  %v11 = vld [vmem:[%s1] sm:$0xff]
  %v12 = vld [vmem:[%s1 + $0x8] sm:$0x3]
  %v13 = vld [vmem:[%s0] sm:$0xff]
  %v14 = vld [vmem:[%s0 + $0x8] sm:$0x3]
  %s15 = smul.u32 0, 10
  %v16 = vlaneseq
  %v17 = vshrl.u32 %v16, 7
  %v18 = vadd.s32 %v17, 8
  %v19 = vstv %s15
  %v20 = vadd.s32 %v19, %v17
  %v21 = vadd.s32 %v19, %v18
  %vm22 = vcmp.lt.s32.totalorder %v20, 10
  %vm23 = vcmp.lt.s32.totalorder %v21, 10
  %vm24 = vcmask 162816
  %v25 = vsel %vm24, %v11, -inf
  %26 = vmax.xlane.f32.xlu0 %v25
  %v27 = vpop.xlane.xlu0 %26
  %vm28 = vcmask 156672
  %v29 = vsel %vm28, %v12, -inf
  %30 = vmax.xlane.f32.xlu0 %v29
  %v31 = vpop.xlane.xlu0 %30
  %v32 = vsub.f32 %v11, %v27
  %v33 = vsub.f32 %v12, %v31
  %v34 = vmul.f32 %v32, 1.442695
  %v35 = vpow.pop %v34
  %v36 = vmul.f32 %v33, 1.442695
  %v37 = vpow.pop %v36
  %v38 = vsel %vm24, %v35, 0.0
  %39 = vadd.xlane.f32.xlu0 %v38
  %v40 = vpop.xlane.xlu0 %39
  %v41 = vsel %vm28, %v37, 0.0
  %42 = vadd.xlane.f32.xlu0 %v41
  %v43 = vpop.xlane.xlu0 %42
  %v44 = vlaneseq
  %v45 = vand.u32 %v44, 127
  %46 = vset.pattern.permute.xlu0 0
  %47 = vperm.xlu0 %46, %v13
  %v48 = vpop.permute.xlu0 %47
  %49 = vset.pattern.permute.xlu0 0
  %50 = vperm.xlu0 %49, %v14
  %v51 = vpop.permute.xlu0 %50
  %vm52 = vcmp.eq.s32.totalorder %v45, %v48
  %vm53 = vcmp.eq.s32.totalorder %v45, %v51
  %v54 = vsel %vm52, %v11, 0.0
  %v55 = vsel %vm53, %v12, 0.0
  %v56 = vsel %vm24, %v54, 0.0
  %57 = vadd.xlane.f32.xlu0 %v56
  %v58 = vpop.xlane.xlu0 %57
  %v59 = vsel %vm28, %v55, 0.0
  %60 = vadd.xlane.f32.xlu0 %v59
  %v61 = vpop.xlane.xlu0 %60
  %v62 = vlog2.pop %v40
  %v63 = vmul.f32 %v62, 0.6931472
  %v64 = vlog2.pop %v43
  %v65 = vmul.f32 %v64, 0.6931472
  %v66 = vadd.f32 %v27, %v63
  %v67 = vadd.f32 %v31, %v65
  %v68 = vsub.f32 %v66, %v58
  %v69 = vsub.f32 %v67, %v61
  %v70 = vsel %vm22, %v68, 0.0
  %v71 = vsel %vm23, %v69, 0.0
  %vm72 = vcmask 7168
  %73 = vst.msk [vmem:[%s2] sm:$0xff] %vm72, %v70
  %vm74 = vcmask 1024
  %75 = vst.msk [vmem:[%s2 + $0x8] sm:$0x3] %vm74, %v71
  // Predicated region
  $region10: #{tpu_custom_call.1} parent=0 // pred_check
    _
  $region11: #{tpu_custom_call.1} parent=0 // pred_check_branch
    %77 = sbr.rel (0) target = $region13
  $region12: #{tpu_custom_call.1} parent=0 // pred_region
    _
  $region13: #{tpu_custom_call.1} parent=0 // pred_fallthru
    _
  // Predicated region
  $region14: #{tpu_custom_call.1} parent=0 // pred_check
    _
  $region15: #{tpu_custom_call.1} parent=0 // pred_check_branch
    %79 = sbr.rel (0) target = $region17
  $region16: #{tpu_custom_call.1} parent=0 // pred_region
    _
  $region17: #{tpu_custom_call.1} parent=0 // pred_fallthru
    _

</llo_original>
